<compile_context>
chip_gen: v7x
topology: tpu7x:2x2x1
jax: 0.10.0
libtpu: 0.0.40
codegen_flags: <defaults>
</compile_context>

<pallas_src>
import functools
import math

import jax
import jax.numpy as jnp
from jax.experimental import pallas as pl
from jax.experimental.pallas import tpu as pltpu

_LANE = 128


def gate_accu_v2_kernel(x_ref, cx_ref, feats_ref, w_ref, out_ref, *, logit_thr):
    # ---- per-row relative L2 error on full (8,128) vregs ----------------
    x = x_ref[...]                                   # (B, NB, 128) f32
    dx = x - cx_ref[...]                             # (B, NB, 128)
    # two-stage lane/sublane reductions -> (B, 1)
    num_sq = jnp.sum(jnp.sum(dx * dx, axis=-1), axis=-1, keepdims=True)
    den_sq = jnp.sum(jnp.sum(x * x, axis=-1), axis=-1, keepdims=True)
    error = jnp.sqrt(num_sq / den_sq)                # (B, 1); one sqrt, exact

    # ---- dynamic threshold + previous accu from the packed small operand
    feats = feats_ref[...]                           # (B, F), F = 2D + 2
    w = w_ref[...]                                   # (1, F); last entry = 0
    F = feats.shape[-1]
    # dyn_thr = cond·(wc+wd) + ccond·(-wd) + bias  (accu column masked by w=0)
    dyn_thr = jnp.sum(feats * w, axis=-1, keepdims=True)       # (B, 1)
    accu_prev = feats[:, F - 1:F]                               # (B, 1)

    # ---- gate -----------------------------------------------------------
    accu = accu_prev + error                         # accumulated error
    logits = accu - dyn_thr
    # sigmoid(logits/tau) > thr   <=>   logits > tau * log(thr/(1-thr))
    gate = (logits > logit_thr).astype(jnp.float32)  # (B, 1), 0.0 / 1.0
    new_accu = (1.0 - gate) * accu                   # cache['accu_error'] update

    out_ref[...] = jnp.concatenate([gate, new_accu], axis=-1)  # (B, 2)


@functools.partial(jax.jit, static_argnames=("logit_thr",))
def _gate_accu_v2_call(x3, cx3, feats, w_row, logit_thr):
    B, NB, _ = x3.shape
    F = feats.shape[-1]
    kernel = functools.partial(gate_accu_v2_kernel, logit_thr=float(logit_thr))

    vmem = pl.BlockSpec(memory_space=pltpu.MemorySpace.VMEM)

    cost = pl.CostEstimate(
        flops=6 * B * NB * _LANE + 4 * B * F + 10 * B,
        transcendentals=1 * B,                        # one sqrt per row
        bytes_accessed=4 * (2 * B * NB * _LANE + B * F + F + 2 * B),
    )

    out = pl.pallas_call(
        kernel,
        out_shape=jax.ShapeDtypeStruct((B, 2), jnp.float32),
        in_specs=[vmem, vmem, vmem, vmem],
        out_specs=vmem,
        cost_estimate=cost,
    )(x3, cx3, feats, w_row)
    return out                                        # (B, 2): [gate | new_accu]


def gate_accu_v2_forward(x, cond, cache, i_name, o_name, *,
                         weight, bias, tau=1.0, thr=0.5):
    """Pallas equivalent of gate_ACCUv2.forward (inference path).

    weight: [1, 2*D] (nn.Linear(2D, 1).weight), bias: [1].
    Returns gate [B] float32 and updates cache['accu_error'] in place.
    """
    B = x.shape[0]
    N = math.prod(x.shape[1:])
    D = cond.shape[1]

    # --- pack x / cache_x as (B, N/128, 128): full-vreg reductions --------
    x2 = jnp.asarray(x, jnp.float32).reshape(B, N)
    cx2 = jnp.asarray(cache[i_name], jnp.float32).reshape(B, N)
    Np = ((N + _LANE - 1) // _LANE) * _LANE
    if Np != N:                                      # zero-pad: norms unaffected
        pad = ((0, 0), (0, Np - N))
        x2 = jnp.pad(x2, pad)
        cx2 = jnp.pad(cx2, pad)
    x3 = x2.reshape(B, Np // _LANE, _LANE)
    cx3 = cx2.reshape(B, Np // _LANE, _LANE)

    # --- small operands: fold everything into two tiny arrays -------------
    cond32 = jnp.asarray(cond, jnp.float32)
    ccond32 = jnp.asarray(cache['cond'], jnp.float32)

    accu_prev = cache.get('accu_error', None)
    if accu_prev is None:
        accu_prev2 = jnp.zeros((B, 1), dtype=jnp.float32)
    else:
        accu_prev2 = jnp.asarray(accu_prev, jnp.float32).reshape(B, 1)

    w = jnp.asarray(weight, jnp.float32).reshape(2 * D)
    wc, wd = w[:D], w[D:]
    b = jnp.asarray(bias, jnp.float32).reshape(1)
    # feats: [cond | ccond | 1 | accu_prev]   (B, 2D+2)
    # w_row: [wc+wd | -wd | bias | 0]         (1, 2D+2)
    feats = jnp.concatenate(
        [cond32, ccond32, jnp.ones((B, 1), jnp.float32), accu_prev2], axis=-1)
    w_row = jnp.concatenate(
        [wc + wd, -wd, b, jnp.zeros((1,), jnp.float32)]).reshape(1, 2 * D + 2)

    # static logit-domain threshold (sigmoid eliminated from the kernel)
    logit_thr = float(tau) * math.log(float(thr) / (1.0 - float(thr)))

    out = _gate_accu_v2_call(x3, cx3, feats, w_row, logit_thr)   # (B, 2)
    gate = out[:, 0]
    cache['accu_error'] = out[:, 1]
    return gate


def _ref_forward(x, cond, cache, i_name, weight, bias, tau, thr):
    """Plain-JAX reference mirroring the PyTorch module (returns gate, new_accu)."""
    B = x.shape[0]
    cache_x = cache[i_name]
    cache_cond = cache['cond']
    delta_cond = cond - cache_cond
    delta = (x - cache_x).reshape(B, -1)
    xf = x.reshape(B, -1)
    error = jnp.linalg.norm(delta, axis=1) / jnp.linalg.norm(xf, axis=1)
    accu_prev = cache.get('accu_error', None)
    accu = error if accu_prev is None else error + accu_prev
    feats = jnp.concatenate([cond, delta_cond], axis=-1)
    dyn_thr = feats @ weight.reshape(-1) + bias.reshape(())
    logits = accu - dyn_thr
    y_soft = jax.nn.sigmoid(logits / tau)
    gate = (y_soft > thr).astype(jnp.float32)
    new_accu = (1.0 - gate) * accu
    return gate, new_accu


if __name__ == "__main__":
    key = jax.random.PRNGKey(0)
    B, C, H, W = 2, 4, 16, 16
    hidden = 32
    ks = jax.random.split(key, 6)

    x = jax.random.normal(ks[0], (B, C, H, W), dtype=jnp.float32)
    cond = jax.random.normal(ks[1], (B, hidden), dtype=jnp.float32)
    cache = {
        'in': x + 0.1 * jax.random.normal(ks[2], (B, C, H, W), dtype=jnp.float32),
        'cond': cond + 0.1 * jax.random.normal(ks[3], (B, hidden), dtype=jnp.float32),
    }
    weight = 0.02 * jax.random.normal(ks[4], (1, 2 * hidden), dtype=jnp.float32)
    bias = 0.02 * jax.random.normal(ks[5], (1,), dtype=jnp.float32)

    # --- call 1: no accumulated error in cache yet ---
    ref_cache = dict(cache)  # snapshot (forward mutates cache)
    gate1 = gate_accu_v2_forward(x, cond, cache, 'in', 'out',
                                 weight=weight, bias=bias, tau=1.0, thr=0.5)
    gate1 = jax.block_until_ready(gate1)
    ref_gate1, ref_accu1 = _ref_forward(x, cond, ref_cache, 'in', weight, bias, 1.0, 0.5)

    assert gate1.shape == (B,) and gate1.dtype == jnp.float32
    assert bool(jnp.all((gate1 == 0.0) | (gate1 == 1.0)))
    assert bool(jnp.allclose(gate1, ref_gate1, atol=1e-6)), (gate1, ref_gate1)
    assert bool(jnp.allclose(cache['accu_error'], ref_accu1, rtol=1e-5, atol=1e-6))

    # --- call 2: exercises the accumulated-error path ---
    ref_cache2 = dict(cache)
    gate2 = gate_accu_v2_forward(x, cond, cache, 'in', 'out',
                                 weight=weight, bias=bias, tau=1.0, thr=0.5)
    gate2 = jax.block_until_ready(gate2)
    ref_gate2, ref_accu2 = _ref_forward(x, cond, ref_cache2, 'in', weight, bias, 1.0, 0.5)

    assert bool(jnp.allclose(gate2, ref_gate2, atol=1e-6)), (gate2, ref_gate2)
    assert bool(jnp.allclose(cache['accu_error'], ref_accu2, rtol=1e-5, atol=1e-6))

    print("KERNEL_OK")
</pallas_src>

<mosaic_0001>
module attributes {stable_mosaic.version = 11 : i64} {
  func.func @gate_accu_v2_kernel(%arg0: memref<2x8x128xf32, #tpu.memory_space<vmem>>, %arg1: memref<2x8x128xf32, #tpu.memory_space<vmem>>, %arg2: memref<2x66xf32, #tpu.memory_space<vmem>>, %arg3: memref<1x66xf32, #tpu.memory_space<vmem>>, %arg4: memref<2x2xf32, #tpu.memory_space<vmem>>) attributes {dimension_semantics = [], scalar_prefetch = 0 : i64, scratch_operands = 0 : i64, tpu.core_type = #tpu.core_type<tc>} {
    %c0 = arith.constant 0 : index
    %c0_0 = arith.constant 0 : index
    %c0_1 = arith.constant 0 : index
    %0 = vector.load %arg0[%c0, %c0_0, %c0_1] : memref<2x8x128xf32, #tpu.memory_space<vmem>>, vector<2x8x128xf32>
    %c0_2 = arith.constant 0 : index
    %c0_3 = arith.constant 0 : index
    %c0_4 = arith.constant 0 : index
    %1 = vector.load %arg1[%c0_2, %c0_3, %c0_4] : memref<2x8x128xf32, #tpu.memory_space<vmem>>, vector<2x8x128xf32>
    %2 = arith.subf %0, %1 : vector<2x8x128xf32>
    %3 = arith.mulf %2, %2 : vector<2x8x128xf32>
    %cst = arith.constant dense<0.000000e+00> : vector<2x8xf32>
    %4 = vector.multi_reduction <add>, %3, %cst [2] : vector<2x8x128xf32> to vector<2x8xf32>
    %cst_5 = arith.constant dense<0.000000e+00> : vector<2xf32>
    %5 = vector.multi_reduction <add>, %4, %cst_5 [1] : vector<2x8xf32> to vector<2xf32>
    %6 = vector.shape_cast %5 : vector<2xf32> to vector<2x1xf32>
    %7 = arith.mulf %0, %0 : vector<2x8x128xf32>
    %cst_6 = arith.constant dense<0.000000e+00> : vector<2x8xf32>
    %8 = vector.multi_reduction <add>, %7, %cst_6 [2] : vector<2x8x128xf32> to vector<2x8xf32>
    %cst_7 = arith.constant dense<0.000000e+00> : vector<2xf32>
    %9 = vector.multi_reduction <add>, %8, %cst_7 [1] : vector<2x8xf32> to vector<2xf32>
    %10 = vector.shape_cast %9 : vector<2xf32> to vector<2x1xf32>
    %11 = arith.divf %6, %10 : vector<2x1xf32>
    %12 = math.sqrt %11 : vector<2x1xf32>
    %c0_8 = arith.constant 0 : index
    %c0_9 = arith.constant 0 : index
    %13 = vector.load %arg2[%c0_8, %c0_9] : memref<2x66xf32, #tpu.memory_space<vmem>>, vector<2x66xf32>
    %c0_10 = arith.constant 0 : index
    %c0_11 = arith.constant 0 : index
    %14 = vector.load %arg3[%c0_10, %c0_11] : memref<1x66xf32, #tpu.memory_space<vmem>>, vector<1x66xf32>
    %15 = vector.broadcast %14 : vector<1x66xf32> to vector<2x66xf32>
    %16 = arith.mulf %13, %15 : vector<2x66xf32>
    %cst_12 = arith.constant dense<0.000000e+00> : vector<2xf32>
    %17 = vector.multi_reduction <add>, %16, %cst_12 [1] : vector<2x66xf32> to vector<2xf32>
    %18 = vector.shape_cast %17 : vector<2xf32> to vector<2x1xf32>
    %19 = vector.extract_strided_slice %13 {offsets = [0, 65], sizes = [2, 1], strides = [1, 1]} : vector<2x66xf32> to vector<2x1xf32>
    %20 = arith.addf %19, %12 : vector<2x1xf32>
    %21 = arith.subf %20, %18 : vector<2x1xf32>
    %cst_13 = arith.constant 0.000000e+00 : f32
    %22 = vector.broadcast %cst_13 : f32 to vector<2x1xf32>
    %23 = arith.cmpf ogt, %21, %22 : vector<2x1xf32>
    %24 = arith.extui %23 : vector<2x1xi1> to vector<2x1xi32>
    %25 = arith.sitofp %24 : vector<2x1xi32> to vector<2x1xf32>
    %cst_14 = arith.constant 1.000000e+00 : f32
    %26 = vector.broadcast %cst_14 : f32 to vector<2x1xf32>
    %27 = arith.subf %26, %25 : vector<2x1xf32>
    %28 = arith.mulf %27, %20 : vector<2x1xf32>
    %29 = tpu.concatenate %25, %28 in 1 : vector<2x1xf32>, vector<2x1xf32> -> vector<2x2xf32>
    %c0_15 = arith.constant 0 : index
    %c0_16 = arith.constant 0 : index
    %30 = vector.load %arg4[%c0_15, %c0_16] : memref<2x2xf32, #tpu.memory_space<vmem>>, vector<2x2xf32>
    tpu.vector_store %arg4[%c0_15, %c0_16], %29 {strides = array<i32>} : memref<2x2xf32, #tpu.memory_space<vmem>>, vector<2x2xf32>,
    return
  }
}

</mosaic_0001>

<llo_original>
// kernel: _gate_accu_v2_call.1
$region0: #{_gate_accu_v2_call.1}
  #allocation0 [shape = 'u32[]', space=smem, size = 0x4, offset = 0x4, fixed_abs, tag = 'smem constant byte address 0x4 - core index']
  #allocation1 [shape = 'u32[144,128]{1,0:T(1,128)}', space=vmem, size = 0x12000, scoped, tag = 'internal scratch']
  %s0 = inlined_call_operand.hbm [shape: f32[2,8,128], index: 0, kind: input, shape index: {}]
  %s1 = inlined_call_operand.hbm [shape: f32[2,8,128], index: 1, kind: input, shape index: {}]
  %s2 = inlined_call_operand.vmem [shape: f32[2,66], index: 2, kind: input, shape index: {}]
  %s3 = inlined_call_operand.vmem [shape: f32[1,66], index: 3, kind: input, shape index: {}]
  %s4 = inlined_call_operand.hbm [shape: f32[2,2], index: 4, kind: output, shape index: {}]
  %s5 = sld [smem:[#allocation0]]
  $region34: #{_gate_accu_v2_call.1} parent=0
    _
  %s7 = ssub.s32 1, %s5
  %s8 = scalar_select 0, %s7, %s5
  $region1: #{_gate_accu_v2_call.1} parent=0
    #allocation2 [shape = 'u8[8192]{0}', space=vmem, size = 0x2000, scoped, tag = 'input window, operand 0, single buffered']
    #allocation3 [shape = 's32[1]{0}', space=sflag, size = 0x4, scoped, tag = 'scoped memory for _gate_accu_v2_call.1']
    #allocation4 [shape = 's32[1]{0}', space=sflag, size = 0x4, scoped, tag = 'scoped memory for _gate_accu_v2_call.1']
    #allocation5 [shape = 'u8[8192]{0}', space=vmem, size = 0x2000, scoped, tag = 'input window, operand 1, single buffered']
    #allocation6 [shape = 's32[1]{0}', space=sflag, size = 0x4, scoped, tag = 'scoped memory for _gate_accu_v2_call.1']
    #allocation7 [shape = 'u8[1024]{0}', space=vmem, size = 0x400, scoped, tag = 'output window, operand 0, single buffered']
    %9 = vsyncpa [#allocation3], 0
    %10 = vsyncpa [#allocation6], 0
    %11 = vsyncpa [#allocation4], 0
    // Predicated region
    $region2: #{_gate_accu_v2_call.1} parent=1 // pred_check
      _
    $region3: #{_gate_accu_v2_call.1} parent=1 // pred_check_branch
      %13 = sbr.rel (0) target = $region5
    $region4: #{_gate_accu_v2_call.1} parent=1 // pred_region
      %s15 = ssub.s32 256, 256
      %16 = vsyncadd [#allocation3], %s15
      %s17 = sshll.u32 [#allocation2], 4
      %s18 = int_to_ptr.vmem [resolvable:$true] %s17
      %23 = dma.hbm_to_vmem [thread:$0]  %s0, 256, %s18, [#allocation3], 128, 128, 8
    $region5: #{_gate_accu_v2_call.1} parent=1 // pred_fallthru
      _
    // Predicated region
    $region6: #{_gate_accu_v2_call.1} parent=1 // pred_check
      _
    $region7: #{_gate_accu_v2_call.1} parent=1 // pred_check_branch
      %25 = sbr.rel (0) target = $region9
    $region8: #{_gate_accu_v2_call.1} parent=1 // pred_region
      %s27 = ssub.s32 256, 256
      %28 = vsyncadd [#allocation6], %s27
      %s29 = sshll.u32 [#allocation5], 4
      %s30 = int_to_ptr.vmem [resolvable:$true] %s29
      %35 = dma.hbm_to_vmem [thread:$0]  %s1, 256, %s30, [#allocation6], 128, 128, 8
    $region9: #{_gate_accu_v2_call.1} parent=1 // pred_fallthru
      _
    // Predicated region
    $region10: #{_gate_accu_v2_call.1} parent=1 // pred_check
      _
    $region11: #{_gate_accu_v2_call.1} parent=1 // pred_check_branch
      %37 = sbr.rel (0) target = $region13
    $region12: #{_gate_accu_v2_call.1} parent=1 // pred_region
      _
    $region13: #{_gate_accu_v2_call.1} parent=1 // pred_fallthru
      _
    // Predicated region
    $region14: #{_gate_accu_v2_call.1} parent=1 // pred_check
      _
    $region15: #{_gate_accu_v2_call.1} parent=1 // pred_check_branch
      %39 = sbr.rel (0) target = $region17
    $region16: #{_gate_accu_v2_call.1} parent=1 // pred_region
      _
    $region17: #{_gate_accu_v2_call.1} parent=1 // pred_fallthru
      _
    // Predicated region
    $region18: #{_gate_accu_v2_call.1} parent=1 // pred_check
      _
    $region19: #{_gate_accu_v2_call.1} parent=1 // pred_check_branch
      %41 = sbr.rel (0) target = $region21
    $region20: #{_gate_accu_v2_call.1} parent=1 // pred_region
      %42 = dma.done [#allocation3], 256
    $region21: #{_gate_accu_v2_call.1} parent=1 // pred_fallthru
      _
    // Predicated region
    $region22: #{_gate_accu_v2_call.1} parent=1 // pred_check
      _
    $region23: #{_gate_accu_v2_call.1} parent=1 // pred_check_branch
      %44 = sbr.rel (0) target = $region25
    $region24: #{_gate_accu_v2_call.1} parent=1 // pred_region
      %45 = dma.done [#allocation6], 256
    $region25: #{_gate_accu_v2_call.1} parent=1 // pred_fallthru
      _
    %v46 = vld [vmem:[#allocation2] sm:$0xff]
    %v47 = vld [vmem:[#allocation2 + $0x8] sm:$0xff]
    %v48 = vld [vmem:[#allocation5] sm:$0xff]
    %v49 = vld [vmem:[#allocation5 + $0x8] sm:$0xff]
    %v50 = vsub.f32 %v46, %v48
    %v51 = vsub.f32 %v47, %v49
    %v52 = vmul.f32 %v50, %v50
    %v53 = vmul.f32 %v51, %v51
    %54 = vadd.xlane.f32.xlu0 %v52
    %v55 = vpop.xlane.xlu0 %54
    %56 = vadd.xlane.f32.xlu0 %v53
    %v57 = vpop.xlane.xlu0 %56
    %v60 = vlaneseq
    %v61 = vand.u32 %v60, 127
    %v62 = vlaneseq
    %v63 = vshrl.u32 %v62, 7
    %v64 = vsub.s32 %v61, %v63
    %v65 = vrot.slane %v55, %v64
    %v66 = vlaneseq
    %v67 = vshrl.u32 %v66, 7
    %v68 = vsub.s32 %v61, %v67
    %v69 = vrot.slane %v57, %v68
    %vm70 = vcmask 1041409
    %v71 = vsel %vm70, %v69, %v65
    %vm73 = vcmask 58368
    %v74 = vsel %vm73, %v71, 0.0
    %75 = vadd.xlane.f32.xlu0 %v74
    %v76 = vpop.xlane.xlu0 %75
    %v77 = vmul.f32 %v46, %v46
    %v78 = vmul.f32 %v47, %v47
    %79 = vadd.xlane.f32.xlu0 %v77
    %v80 = vpop.xlane.xlu0 %79
    %81 = vadd.xlane.f32.xlu0 %v78
    %v82 = vpop.xlane.xlu0 %81
    %v85 = vlaneseq
    %v86 = vshrl.u32 %v85, 7
    %v87 = vsub.s32 %v61, %v86
    %v88 = vrot.slane %v80, %v87
    %v89 = vlaneseq
    %v90 = vshrl.u32 %v89, 7
    %v91 = vsub.s32 %v61, %v90
    %v92 = vrot.slane %v82, %v91
    %v93 = vsel %vm70, %v92, %v88
    %v95 = vsel %vm73, %v93, 0.0
    %96 = vadd.xlane.f32.xlu0 %v95
    %v97 = vpop.xlane.xlu0 %96
    %v98 = vrcp.pop %v97
    %v99 = vmul.f32 %v76, %v98
    %v100 = vrsqrt.pop %v99
    %v101 = vmul.f32 %v99, %v100
    %vm102 = vcmp.eq.f32.partialorder %v99, inf
    %v103 = vsel %vm102, %v99, %v101
    %vm104 = vcmp.eq.f32.partialorder %v99, 0.0
    %v105 = vand.u32 %v99, 2147483648
    %v106 = vsel %vm104, %v105, %v103
    %v107 = vld [vmem:[%s2] sm:$0x3]
    %v108 = vld [vmem:[%s3] sm:$0x1]
    %v110 = vlaneseq
    %v111 = vshrl.u32 %v110, 7
    %v112 = vsub.s32 0, %v111
    %v113 = vrot.slane %v108, %v112
    %v115 = vmul.f32 %v107, %v113
    %vm116 = vcmask 533504
    %v117 = vsel %vm116, %v115, 0.0
    %118 = vadd.xlane.f32.xlu0 %v117
    %v119 = vpop.xlane.xlu0 %118
    %v120 = vadd.f32 %v107, %v106
    %v121 = vsub.f32 %v120, %v119
    %vm122 = vcmp.gt.f32.partialorder %v121, 0.0
    %v123 = vsel %vm122, 1, 0
    %v124 = vcvt.s32.f32 %v123
    %v125 = vsub.f32 1.0, %v124
    %v126 = vmul.f32 %v125, %v120
    %128 = vrot.lane.b32.xlu0 %v124, 63
    %v129 = vpop.permute.xlu0 %128
    %132 = vrot.lane.b32.xlu0 %v126, 64
    %v133 = vpop.permute.xlu0 %132
    %vm135 = vcmask 7168
    %v136 = vsel %vm135, %v129, %v133
    %vm137 = vcmask 9216
    %138 = vst.msk [vmem:[#allocation7] sm:$0x3] %vm137, %v136
    // Predicated region
    $region26: #{_gate_accu_v2_call.1} parent=1 // pred_check
      _
    $region27: #{_gate_accu_v2_call.1} parent=1 // pred_check_branch
      %140 = sbr.rel (0) target = $region29
    $region28: #{_gate_accu_v2_call.1} parent=1 // pred_region
      %s142 = ssub.s32 32, 32
      %143 = vsyncadd [#allocation4], %s142
      %s145 = sshll.u32 [#allocation7], 4
      %s146 = int_to_ptr.vmem [resolvable:$true] %s145
      %148 = dma.vmem_to_hbm [thread:$0]  %s146, 32, %s4, [#allocation4]
    $region29: #{_gate_accu_v2_call.1} parent=1 // pred_fallthru
      _
    // Predicated region
    $region30: #{_gate_accu_v2_call.1} parent=1 // pred_check
      _
    $region31: #{_gate_accu_v2_call.1} parent=1 // pred_check_branch
      %150 = sbr.rel (0) target = $region33
    $region32: #{_gate_accu_v2_call.1} parent=1 // pred_region
      %151 = dma.done [#allocation4], 32
    $region33: #{_gate_accu_v2_call.1} parent=1 // pred_fallthru
      _
    %152 = vsyncpa [#allocation3], 1
    %153 = vsyncpa [#allocation6], 1
    %154 = vsyncpa [#allocation4], 1

</llo_original>
